<compile_context>
chip_gen: v7x
topology: tpu7x:2x2x1
jax: 0.10.0
libtpu: 0.0.40
codegen_flags: <defaults>
</compile_context>

<pallas_src>
import jax
import jax.numpy as jnp
from jax.experimental import pallas as pl
from jax.experimental.pallas import tpu as pltpu


def _copy_kernel(x_ref, o_ref):
    # Identity copy of the current (rows_tile, lanes) block: pure vld/vst.
    o_ref[...] = x_ref[...]


_LANE = 128
# ~4 MiB per block: with double-buffered input + output that is ~16 MiB of
# VMEM -- inside v7x's 64 MiB physical VMEM with headroom, and already ~85-86%
# of HBM roofline on v5e/v6e.
_BLOCK_BYTES_TARGET = 4 * 1024 * 1024
# Explicit scoped-VMEM cap on every pallas_call (v5e default is only 16 MiB;
# v7x physical is 64 MiB -- 40 MiB is safe everywhere).
_VMEM_LIMIT_BYTES = 40 * 1024 * 1024
# Below this, a kernel launch costs more than the copy itself.
_MIN_KERNEL_BYTES = 256 * 1024


def _sublane(dtype) -> int:
    """Packed sublane count: 8 for 32-bit, 16 for 16-bit, 32 for 8-bit."""
    bits = jnp.dtype(dtype).itemsize * 8
    return max(8, 256 // bits)


def _choose_lanes(total: int):
    """Pick a lane width (multiple of 128) and the flat padding it needs."""
    for lanes in (1024, 512, 256, 128):
        if total % lanes == 0:
            return lanes, 0
    lanes = _LANE
    pad = (-total) % lanes
    return lanes, pad


def materialize_copy(x: jax.Array, *, min_kernel_bytes: int = _MIN_KERNEL_BYTES) -> jax.Array:
    """Identity copy of `x` into a fresh buffer via a tiled Pallas kernel.

    Only needed when the caller explicitly wants a new buffer; the default
    Reshape path below is a free metadata view and moves zero bytes.
    """
    orig_shape = x.shape
    total = x.size
    itemsize = jnp.dtype(x.dtype).itemsize
    nbytes = total * itemsize

    # Tiny (or empty) tensors: plain XLA copy; kernel-launch overhead dominates.
    if total == 0 or nbytes < min_kernel_bytes:
        return jnp.copy(x)

    lanes, pad = _choose_lanes(total)
    flat = jnp.reshape(x, (total,))
    if pad:
        flat = jnp.pad(flat, (0, pad))
    padded = total + pad
    rows = padded // lanes

    # Fixed row tile: multiple of the packed sublane count, ~<= 4 MiB per block,
    # clamped so tiny slabs do not over-allocate.  grid = cdiv handles the
    # ragged last block -- no divisor search, no full-slab fallback.
    sub = _sublane(x.dtype)
    tr = (_BLOCK_BYTES_TARGET // (lanes * itemsize)) // sub * sub
    tr = max(sub, tr)
    rows_up = ((rows + sub - 1) // sub) * sub
    tr = min(tr, rows_up)

    slab = jnp.reshape(flat, (rows, lanes))
    grid = (pl.cdiv(rows, tr),)

    out = pl.pallas_call(
        _copy_kernel,
        out_shape=jax.ShapeDtypeStruct((rows, lanes), x.dtype),
        grid=grid,
        in_specs=[pl.BlockSpec((tr, lanes), lambda i: (i, 0))],
        out_specs=pl.BlockSpec((tr, lanes), lambda i: (i, 0)),
        compiler_params=pltpu.CompilerParams(
            dimension_semantics=("parallel",),
            vmem_limit_bytes=_VMEM_LIMIT_BYTES,
        ),
        cost_estimate=pl.CostEstimate(
            flops=0, transcendentals=0, bytes_accessed=2 * nbytes),
    )(slab)

    flat_out = jnp.reshape(out, (padded,))
    if pad:
        flat_out = flat_out[:total]
    return jnp.reshape(flat_out, orig_shape)


class Reshape:
    """JAX/Pallas equivalent of the PyTorch Reshape(nn.Module).

    torch's .view() is metadata-only, so the default forward is a free
    jnp.reshape (no HBM traffic, no kernel launch).  Pass materialize=True to
    force the data through the tiled Pallas identity-copy kernel.
    """

    def __init__(self, *args, materialize: bool = False,
                 min_kernel_bytes: int = _MIN_KERNEL_BYTES):
        self.shape = tuple(args)
        self.materialize = materialize
        self.min_kernel_bytes = min_kernel_bytes

    def __call__(self, x: jax.Array) -> jax.Array:
        new_shape = (x.shape[0],) + self.shape
        if self.materialize:
            y = materialize_copy(x, min_kernel_bytes=self.min_kernel_bytes)
            return jnp.reshape(y, new_shape)
        return jnp.reshape(x, new_shape)


if __name__ == "__main__":
    key = jax.random.PRNGKey(0)
    # Small NCHW input consistent with an (A)CGAN feature map.
    B, C, H, W = 2, 4, 16, 16
    x = jax.random.normal(key, (B, C, H, W), dtype=jnp.float32)
    ref = jnp.reshape(x, (B, C * H * W))

    # Default path: free view, exactly the torch .view() semantics.
    y_view = jax.block_until_ready(Reshape(C * H * W)(x))
    assert y_view.shape == (B, C * H * W)
    assert y_view.dtype == x.dtype
    assert bool(jnp.all(y_view == ref))

    # Pallas materializing path (min_kernel_bytes=0 forces the kernel even for
    # this small feature map, so the tiled copy is actually exercised).
    y_mat = jax.block_until_ready(
        Reshape(C * H * W, materialize=True, min_kernel_bytes=0)(x))
    assert y_mat.shape == (B, C * H * W)
    assert y_mat.dtype == x.dtype
    assert bool(jnp.all(y_mat == ref))

    # Multi-dim target shape through the Pallas path, e.g. Reshape(C, H*W).
    y2 = jax.block_until_ready(
        Reshape(C, H * W, materialize=True, min_kernel_bytes=0)(x))
    ref2 = jnp.reshape(x, (B, C, H * W))
    assert y2.shape == (B, C, H * W)
    assert bool(jnp.all(y2 == ref2))

    # Robustness: element count NOT a multiple of 128 (pad + tiled copy + slice).
    key2 = jax.random.PRNGKey(1)
    x_odd = jax.random.normal(key2, (2, 3, 5, 7), dtype=jnp.float32)  # 210 elems
    y_odd = jax.block_until_ready(
        Reshape(3 * 5 * 7, materialize=True, min_kernel_bytes=0)(x_odd))
    assert y_odd.shape == (2, 3 * 5 * 7)
    assert bool(jnp.all(y_odd == jnp.reshape(x_odd, (2, 3 * 5 * 7))))

    # Sub-32-bit dtype (bf16) uses a 16-row sublane-packed tile.
    x_bf16 = x.astype(jnp.bfloat16)
    y_bf16 = jax.block_until_ready(
        Reshape(C * H * W, materialize=True, min_kernel_bytes=0)(x_bf16))
    assert y_bf16.dtype == jnp.bfloat16
    assert bool(jnp.all(y_bf16 == jnp.reshape(x_bf16, (B, C * H * W))))

    print("KERNEL_OK")
</pallas_src>

<mosaic_0001>
module attributes {stable_mosaic.version = 11 : i64} {
  func.func @_copy_kernel(%arg0: i32, %arg1: memref<8x1024xf32, #tpu.memory_space<vmem>>, %arg2: memref<8x1024xf32, #tpu.memory_space<vmem>>) attributes {dimension_semantics = [#tpu.dimension_semantics<parallel>], iteration_bounds = array<i64: 1>, scalar_prefetch = 0 : i64, scratch_operands = 0 : i64, tpu.core_type = #tpu.core_type<tc>, window_params = [{transform_indices = @transform_0, window_bounds = array<i64: 8, 1024>}, {transform_indices = @transform_1, window_bounds = array<i64: 8, 1024>}]} {
    %c0 = arith.constant 0 : index
    %c0_0 = arith.constant 0 : index
    %0 = vector.load %arg1[%c0, %c0_0] : memref<8x1024xf32, #tpu.memory_space<vmem>>, vector<8x1024xf32>
    %c0_1 = arith.constant 0 : index
    %c0_2 = arith.constant 0 : index
    %1 = vector.load %arg2[%c0_1, %c0_2] : memref<8x1024xf32, #tpu.memory_space<vmem>>, vector<8x1024xf32>
    tpu.vector_store %arg2[%c0_1, %c0_2], %0 {strides = array<i32>} : memref<8x1024xf32, #tpu.memory_space<vmem>>, vector<8x1024xf32>,
    return
  }
  func.func @transform_0(%arg0: i32) -> (i32, i32) {
    %c0_i32 = arith.constant 0 : i32
    %c0_i32_0 = arith.constant 0 : i32
    return %arg0, %c0_i32 : i32, i32
  }
  func.func @transform_1(%arg0: i32) -> (i32, i32) {
    %c0_i32 = arith.constant 0 : i32
    %c0_i32_0 = arith.constant 0 : i32
    return %arg0, %c0_i32 : i32, i32
  }
}

</mosaic_0001>

<llo_original>
// kernel: tpu_custom_call.1
$region0: #{tpu_custom_call.1}
  #allocation0 [shape = 'u32[]', space=smem, size = 0x4, offset = 0x4, fixed_abs, tag = 'smem constant byte address 0x4 - core index']
  #allocation1 [shape = 'u32[144,128]{1,0:T(1,128)}', space=vmem, size = 0x12000, scoped, tag = 'internal scratch']
  %s0 = inlined_call_operand.hbm [shape: f32[2,1024], index: 0, kind: input, shape index: {}]
  %s1 = inlined_call_operand.hbm [shape: f32[2,1024], index: 1, kind: output, shape index: {}]
  %s2 = sld [smem:[#allocation0]]
  $region18: #{tpu_custom_call.1} parent=0
    _
  %s4 = ssub.s32 1, %s2
  %s5 = scalar_select 0, %s4, %s2
  $region1: #{tpu_custom_call.1} parent=0
    #allocation2 [shape = 'u8[32768]{0}', space=vmem, size = 0x8000, scoped, tag = 'input window, operand 0, single buffered']
    #allocation3 [shape = 's32[1]{0}', space=sflag, size = 0x4, scoped, tag = 'scoped memory for tpu_custom_call.1']
    #allocation4 [shape = 's32[1]{0}', space=sflag, size = 0x4, scoped, tag = 'scoped memory for tpu_custom_call.1']
    #allocation5 [shape = 'u8[32768]{0}', space=vmem, size = 0x8000, scoped, tag = 'output window, operand 0, single buffered']
    %6 = vsyncpa [#allocation3], 0
    %7 = vsyncpa [#allocation4], 0
    // Predicated region
    $region2: #{tpu_custom_call.1} parent=1 // pred_check
      _
    $region3: #{tpu_custom_call.1} parent=1 // pred_check_branch
      %9 = sbr.rel (0) target = $region5
    $region4: #{tpu_custom_call.1} parent=1 // pred_region
      %s11 = ssub.s32 1024, 256
      %12 = vsyncadd [#allocation3], %s11
      %s13 = sshll.u32 [#allocation2], 4
      %s14 = int_to_ptr.vmem [resolvable:$true] %s13
      %19 = dma.hbm_to_vmem [thread:$0]  %s0, 256, %s14, [#allocation3], 256, 256, 16
    $region5: #{tpu_custom_call.1} parent=1 // pred_fallthru
      _
    // Predicated region
    $region6: #{tpu_custom_call.1} parent=1 // pred_check
      _
    $region7: #{tpu_custom_call.1} parent=1 // pred_check_branch
      %21 = sbr.rel (0) target = $region9
    $region8: #{tpu_custom_call.1} parent=1 // pred_region
      %22 = dma.done [#allocation3], 1024
    $region9: #{tpu_custom_call.1} parent=1 // pred_fallthru
      _
    %v23 = vld [vmem:[#allocation2] sm:$0xff]
    %v24 = vld [vmem:[#allocation2 + $0x8] sm:$0xff]
    %v25 = vld [vmem:[#allocation2 + $0x10] sm:$0xff]
    %v26 = vld [vmem:[#allocation2 + $0x18] sm:$0xff]
    %v27 = vld [vmem:[#allocation2 + $0x20] sm:$0xff]
    %v28 = vld [vmem:[#allocation2 + $0x28] sm:$0xff]
    %v29 = vld [vmem:[#allocation2 + $0x30] sm:$0xff]
    %v30 = vld [vmem:[#allocation2 + $0x38] sm:$0xff]
    %31 = vst [vmem:[#allocation5] sm:$0xff] %v23
    %32 = vst [vmem:[#allocation5 + $0x8] sm:$0xff] %v24
    %33 = vst [vmem:[#allocation5 + $0x10] sm:$0xff] %v25
    %34 = vst [vmem:[#allocation5 + $0x18] sm:$0xff] %v26
    %35 = vst [vmem:[#allocation5 + $0x20] sm:$0xff] %v27
    %36 = vst [vmem:[#allocation5 + $0x28] sm:$0xff] %v28
    %37 = vst [vmem:[#allocation5 + $0x30] sm:$0xff] %v29
    %38 = vst [vmem:[#allocation5 + $0x38] sm:$0xff] %v30
    // Predicated region
    $region10: #{tpu_custom_call.1} parent=1 // pred_check
      _
    $region11: #{tpu_custom_call.1} parent=1 // pred_check_branch
      %40 = sbr.rel (0) target = $region13
    $region12: #{tpu_custom_call.1} parent=1 // pred_region
      %s42 = ssub.s32 1024, 256
      %43 = vsyncadd [#allocation4], %s42
      %s44 = sshll.u32 [#allocation5], 4
      %s45 = int_to_ptr.vmem [resolvable:$true] %s44
      %50 = dma.vmem_to_hbm [thread:$0]  %s45, 256, %s1, [#allocation4], 256, 256, 16
    $region13: #{tpu_custom_call.1} parent=1 // pred_fallthru
      _
    // Predicated region
    $region14: #{tpu_custom_call.1} parent=1 // pred_check
      _
    $region15: #{tpu_custom_call.1} parent=1 // pred_check_branch
      %52 = sbr.rel (0) target = $region17
    $region16: #{tpu_custom_call.1} parent=1 // pred_region
      %53 = dma.done [#allocation4], 1024
    $region17: #{tpu_custom_call.1} parent=1 // pred_fallthru
      _
    %54 = vsyncpa [#allocation3], 1
    %55 = vsyncpa [#allocation4], 1

</llo_original>
